<compile_context>
chip_gen: v6e
topology: v6e:2x2x1
jax: 0.10.0
libtpu: 0.0.40
codegen_flags: <defaults>
</compile_context>

<pallas_src>
import jax
import jax.numpy as jnp
from jax import lax
from jax.experimental import pallas as pl
from jax.experimental.pallas import tpu as pltpu

D_IN = 10    # fc1 in_features
D_HID = 20   # fc1 out / submodule / fc2 in
D_OUT = 10   # fc2 out_features

# contract last dim of activations with last dim of a PyTorch-layout [out, in] weight
_DN_XWT = (((1,), (1,)), ((), ()))


def _round_up(n, m):
    return ((n + m - 1) // m) * m


def _nondiff_module_kernel(x_ref, w1_ref, b1_ref, ws_ref, bs_ref, w2_ref, b2_ref, o_ref):
    x = x_ref[...]                                                  # [TB, 10]

    # fc1: x @ W1^T + b1
    h = lax.dot_general(x, w1_ref[...], _DN_XWT,
                        preferred_element_type=jnp.float32) + b1_ref[...]   # [TB, 20]
    skip = h

    # submodule: round(h @ Ws^T + bs); round-half-to-even matches torch.round.
    # (.long().float() omitted: identity for in-range integral values; torch's
    #  int64 cast only diverges for |y| >= 2^63 / non-finite, unreachable here.)
    s = lax.dot_general(h, ws_ref[...], _DN_XWT,
                        preferred_element_type=jnp.float32) + bs_ref[...]   # [TB, 20]
    s = jnp.round(s)

    # fc2: (s + skip) @ W2^T + b2
    y = lax.dot_general(s + skip, w2_ref[...], _DN_XWT,
                        preferred_element_type=jnp.float32) + b2_ref[...]   # [TB, 10]
    o_ref[...] = y.astype(o_ref.dtype)


def nondiff_module_forward(x, w1, b1, ws, bs, w2, b2, *, block_b=256):
    """Full NonDiffModule forward.

    x : [B, 10] f32
    w1: [20, 10], b1: [20]      (fc1, PyTorch [out, in] layout)
    ws: [20, 20], bs: [20]      (submodule.fc1)
    w2: [10, 20], b2: [10]      (fc2)
    returns [B, 10] f32
    """
    B = x.shape[0]
    # Batch tile: multiple of 8 sublanes, capped so weights + double-buffered
    # x/out tiles stay far under the scoped VMEM limit (incl. v7x's 32/64 MiB).
    TB = min(block_b, _round_up(B, 8))
    Bp = _round_up(B, TB)
    if Bp != B:
        x = jnp.pad(x, ((0, Bp - B), (0, 0)))

    out = pl.pallas_call(
        _nondiff_module_kernel,
        out_shape=jax.ShapeDtypeStruct((Bp, D_OUT), jnp.float32),
        grid=(Bp // TB,),
        in_specs=[
            pl.BlockSpec((TB, D_IN), lambda i: (i, 0)),        # x: tiled over batch
            pl.BlockSpec((D_HID, D_IN), lambda i: (0, 0)),     # w1: resident
            pl.BlockSpec((1, D_HID), lambda i: (0, 0)),        # b1
            pl.BlockSpec((D_HID, D_HID), lambda i: (0, 0)),    # ws
            pl.BlockSpec((1, D_HID), lambda i: (0, 0)),        # bs
            pl.BlockSpec((D_OUT, D_HID), lambda i: (0, 0)),    # w2
            pl.BlockSpec((1, D_OUT), lambda i: (0, 0)),        # b2
        ],
        out_specs=pl.BlockSpec((TB, D_OUT), lambda i: (i, 0)),
        compiler_params=pltpu.CompilerParams(
            dimension_semantics=("parallel",)),                # v7x: 2 TCs share the batch grid
    )(x, w1, b1.reshape(1, D_HID), ws, bs.reshape(1, D_HID), w2, b2.reshape(1, D_OUT))
    return out[:B]


def _reference(x, w1, b1, ws, bs, w2, b2):
    h = x @ w1.T + b1
    s = jnp.round(h @ ws.T + bs)
    return (s + h) @ w2.T + b2


if __name__ == "__main__":
    key = jax.random.PRNGKey(0)
    k_x, k_w1, k_b1, k_ws, k_bs, k_w2, k_b2 = jax.random.split(key, 7)

    B = 8
    x = jax.random.normal(k_x, (B, D_IN), dtype=jnp.float32)

    def linear_init(kw, kb, out_f, in_f):
        bound = 1.0 / (in_f ** 0.5)
        w = jax.random.uniform(kw, (out_f, in_f), minval=-bound, maxval=bound,
                               dtype=jnp.float32)
        b = jax.random.uniform(kb, (out_f,), minval=-bound, maxval=bound,
                               dtype=jnp.float32)
        return w, b

    w1, b1 = linear_init(k_w1, k_b1, D_HID, D_IN)    # fc1: Linear(10, 20)
    ws, bs = linear_init(k_ws, k_bs, D_HID, D_HID)   # submodule.fc1: Linear(20, 20)
    w2, b2 = linear_init(k_w2, k_b2, D_OUT, D_HID)   # fc2: Linear(20, 10)

    out = nondiff_module_forward(x, w1, b1, ws, bs, w2, b2)
    jax.block_until_ready(out)

    ref = _reference(x, w1, b1, ws, bs, w2, b2)
    assert out.shape == (B, D_OUT)
    assert bool(jnp.allclose(out, ref, rtol=1e-5, atol=1e-5)), "mismatch vs pure-JAX reference"
    print("KERNEL_OK")
</pallas_src>

<mosaic_0001>
module attributes {stable_mosaic.version = 11 : i64} {
  func.func @_nondiff_module_kernel(%arg0: i32, %arg1: memref<8x10xf32, #tpu.memory_space<vmem>>, %arg2: memref<20x10xf32, #tpu.memory_space<vmem>>, %arg3: memref<1x20xf32, #tpu.memory_space<vmem>>, %arg4: memref<20x20xf32, #tpu.memory_space<vmem>>, %arg5: memref<1x20xf32, #tpu.memory_space<vmem>>, %arg6: memref<10x20xf32, #tpu.memory_space<vmem>>, %arg7: memref<1x10xf32, #tpu.memory_space<vmem>>, %arg8: memref<8x10xf32, #tpu.memory_space<vmem>>) attributes {dimension_semantics = [#tpu.dimension_semantics<parallel>], iteration_bounds = array<i64: 1>, scalar_prefetch = 0 : i64, scratch_operands = 0 : i64, tpu.core_type = #tpu.core_type<tc>, window_params = [{transform_indices = @transform_0, window_bounds = array<i64: 8, 10>}, {pipeline_mode = #tpu.pipeline_mode<synchronous>, transform_indices = @transform_1, window_bounds = array<i64: 20, 10>}, {pipeline_mode = #tpu.pipeline_mode<synchronous>, transform_indices = @transform_2, window_bounds = array<i64: 1, 20>}, {pipeline_mode = #tpu.pipeline_mode<synchronous>, transform_indices = @transform_3, window_bounds = array<i64: 20, 20>}, {pipeline_mode = #tpu.pipeline_mode<synchronous>, transform_indices = @transform_4, window_bounds = array<i64: 1, 20>}, {pipeline_mode = #tpu.pipeline_mode<synchronous>, transform_indices = @transform_5, window_bounds = array<i64: 10, 20>}, {pipeline_mode = #tpu.pipeline_mode<synchronous>, transform_indices = @transform_6, window_bounds = array<i64: 1, 10>}, {transform_indices = @transform_7, window_bounds = array<i64: 8, 10>}]} {
    %c0 = arith.constant 0 : index
    %c0_0 = arith.constant 0 : index
    %0 = vector.load %arg1[%c0, %c0_0] : memref<8x10xf32, #tpu.memory_space<vmem>>, vector<8x10xf32>
    %c0_1 = arith.constant 0 : index
    %c0_2 = arith.constant 0 : index
    %1 = vector.load %arg2[%c0_1, %c0_2] : memref<20x10xf32, #tpu.memory_space<vmem>>, vector<20x10xf32>
    %cst = arith.constant dense<0.000000e+00> : vector<8x20xf32>
    %2 = tpu.matmul %0, %1, %cst {dimension_numbers = #tpu.dot_dimension_numbers<[1], [1], [0], [0], [0, 0, 1, 0], [], []>} : vector<8x10xf32>, vector<20x10xf32>, vector<8x20xf32> -> vector<8x20xf32>
    %c0_3 = arith.constant 0 : index
    %c0_4 = arith.constant 0 : index
    %3 = vector.load %arg3[%c0_3, %c0_4] : memref<1x20xf32, #tpu.memory_space<vmem>>, vector<1x20xf32>
    %4 = vector.broadcast %3 : vector<1x20xf32> to vector<8x20xf32>
    %5 = arith.addf %2, %4 : vector<8x20xf32>
    %c0_5 = arith.constant 0 : index
    %c0_6 = arith.constant 0 : index
    %6 = vector.load %arg4[%c0_5, %c0_6] : memref<20x20xf32, #tpu.memory_space<vmem>>, vector<20x20xf32>
    %cst_7 = arith.constant dense<0.000000e+00> : vector<8x20xf32>
    %7 = tpu.matmul %5, %6, %cst_7 {dimension_numbers = #tpu.dot_dimension_numbers<[1], [1], [0], [0], [0, 0, 1, 0], [], []>} : vector<8x20xf32>, vector<20x20xf32>, vector<8x20xf32> -> vector<8x20xf32>
    %c0_8 = arith.constant 0 : index
    %c0_9 = arith.constant 0 : index
    %8 = vector.load %arg5[%c0_8, %c0_9] : memref<1x20xf32, #tpu.memory_space<vmem>>, vector<1x20xf32>
    %9 = vector.broadcast %8 : vector<1x20xf32> to vector<8x20xf32>
    %10 = arith.addf %7, %9 : vector<8x20xf32>
    %11 = math.roundeven %10 : vector<8x20xf32>
    %12 = arith.addf %11, %5 : vector<8x20xf32>
    %c0_10 = arith.constant 0 : index
    %c0_11 = arith.constant 0 : index
    %13 = vector.load %arg6[%c0_10, %c0_11] : memref<10x20xf32, #tpu.memory_space<vmem>>, vector<10x20xf32>
    %cst_12 = arith.constant dense<0.000000e+00> : vector<8x10xf32>
    %14 = tpu.matmul %12, %13, %cst_12 {dimension_numbers = #tpu.dot_dimension_numbers<[1], [1], [0], [0], [0, 0, 1, 0], [], []>} : vector<8x20xf32>, vector<10x20xf32>, vector<8x10xf32> -> vector<8x10xf32>
    %c0_13 = arith.constant 0 : index
    %c0_14 = arith.constant 0 : index
    %15 = vector.load %arg7[%c0_13, %c0_14] : memref<1x10xf32, #tpu.memory_space<vmem>>, vector<1x10xf32>
    %16 = vector.broadcast %15 : vector<1x10xf32> to vector<8x10xf32>
    %17 = arith.addf %14, %16 : vector<8x10xf32>
    %c0_15 = arith.constant 0 : index
    %c0_16 = arith.constant 0 : index
    %18 = vector.load %arg8[%c0_15, %c0_16] : memref<8x10xf32, #tpu.memory_space<vmem>>, vector<8x10xf32>
    tpu.vector_store %arg8[%c0_15, %c0_16], %17 {strides = array<i32>} : memref<8x10xf32, #tpu.memory_space<vmem>>, vector<8x10xf32>,
    return
  }
  func.func @transform_0(%arg0: i32) -> (i32, i32) {
    %c0_i32 = arith.constant 0 : i32
    %c0_i32_0 = arith.constant 0 : i32
    return %arg0, %c0_i32 : i32, i32
  }
  func.func @transform_1(%arg0: i32) -> (i32, i32) {
    %c0_i32 = arith.constant 0 : i32
    %c0_i32_0 = arith.constant 0 : i32
    %c0_i32_1 = arith.constant 0 : i32
    return %c0_i32, %c0_i32_0 : i32, i32
  }
  func.func @transform_2(%arg0: i32) -> (i32, i32) {
    %c0_i32 = arith.constant 0 : i32
    %c0_i32_0 = arith.constant 0 : i32
    %c0_i32_1 = arith.constant 0 : i32
    return %c0_i32, %c0_i32_0 : i32, i32
  }
  func.func @transform_3(%arg0: i32) -> (i32, i32) {
    %c0_i32 = arith.constant 0 : i32
    %c0_i32_0 = arith.constant 0 : i32
    %c0_i32_1 = arith.constant 0 : i32
    return %c0_i32, %c0_i32_0 : i32, i32
  }
  func.func @transform_4(%arg0: i32) -> (i32, i32) {
    %c0_i32 = arith.constant 0 : i32
    %c0_i32_0 = arith.constant 0 : i32
    %c0_i32_1 = arith.constant 0 : i32
    return %c0_i32, %c0_i32_0 : i32, i32
  }
  func.func @transform_5(%arg0: i32) -> (i32, i32) {
    %c0_i32 = arith.constant 0 : i32
    %c0_i32_0 = arith.constant 0 : i32
    %c0_i32_1 = arith.constant 0 : i32
    return %c0_i32, %c0_i32_0 : i32, i32
  }
  func.func @transform_6(%arg0: i32) -> (i32, i32) {
    %c0_i32 = arith.constant 0 : i32
    %c0_i32_0 = arith.constant 0 : i32
    %c0_i32_1 = arith.constant 0 : i32
    return %c0_i32, %c0_i32_0 : i32, i32
  }
  func.func @transform_7(%arg0: i32) -> (i32, i32) {
    %c0_i32 = arith.constant 0 : i32
    %c0_i32_0 = arith.constant 0 : i32
    return %arg0, %c0_i32 : i32, i32
  }
}

</mosaic_0001>

<llo_original>
// kernel: tpu_custom_call.1
$region0: #{tpu_custom_call.1}
  #allocation0 [shape = 'u32[]', space=smem, size = 0x4, offset = 0x4, fixed_abs, tag = 'smem constant byte address 0x4 - core index']
  #allocation1 [shape = 'u32[144,128]{1,0:T(1,128)}', space=vmem, size = 0x12000, scoped, tag = 'internal scratch']
  %s0 = inlined_call_operand.hbm [shape: f32[8,10], index: 0, kind: input, shape index: {}]
  %s1 = inlined_call_operand.vmem [shape: f32[20,10], index: 1, kind: input, shape index: {}]
  %s2 = inlined_call_operand.vmem [shape: f32[1,20], index: 2, kind: input, shape index: {}]
  %s3 = inlined_call_operand.vmem [shape: f32[20,20], index: 3, kind: input, shape index: {}]
  %s4 = inlined_call_operand.vmem [shape: f32[1,20], index: 4, kind: input, shape index: {}]
  %s5 = inlined_call_operand.vmem [shape: f32[10,20], index: 5, kind: input, shape index: {}]
  %s6 = inlined_call_operand.vmem [shape: f32[1,10], index: 6, kind: input, shape index: {}]
  %s7 = inlined_call_operand.hbm [shape: f32[8,10], index: 7, kind: output, shape index: {}]
  %s8 = sld [smem:[#allocation0]]
  $region42: #{tpu_custom_call.1} parent=0
    _
  %s10 = ssub.s32 1, %s8
  %s11 = scalar_select 0, %s10, %s8
  $region1: #{tpu_custom_call.1} parent=0
    #allocation2 [shape = 'u8[4096]{0}', space=vmem, size = 0x1000, scoped, tag = 'input window, operand 0, single buffered']
    #allocation3 [shape = 's32[1]{0}', space=sflag, size = 0x4, scoped, tag = 'scoped memory for tpu_custom_call.1']
    #allocation4 [shape = 's32[1]{0}', space=sflag, size = 0x4, scoped, tag = 'scoped memory for tpu_custom_call.1']
    #allocation5 [shape = 'u8[4096]{0}', space=vmem, size = 0x1000, scoped, tag = 'output window, operand 0, single buffered']
    %12 = vsyncpa [#allocation3], 0
    %13 = vsyncpa [#allocation4], 0
    // Predicated region
    $region2: #{tpu_custom_call.1} parent=1 // pred_check
      _
    $region3: #{tpu_custom_call.1} parent=1 // pred_check_branch
      %15 = sbr.rel (0) target = $region5
    $region4: #{tpu_custom_call.1} parent=1 // pred_region
      %s17 = ssub.s32 128, 128
      %18 = vsyncadd [#allocation3], %s17
      %s20 = sshll.u32 [#allocation2], 4
      %s21 = int_to_ptr.vmem [resolvable:$true] %s20
      %23 = dma.hbm_to_vmem [thread:$0]  %s0, 128, %s21, [#allocation3]
    $region5: #{tpu_custom_call.1} parent=1 // pred_fallthru
      _
    // Predicated region
    $region6: #{tpu_custom_call.1} parent=1 // pred_check
      _
    $region7: #{tpu_custom_call.1} parent=1 // pred_check_branch
      %25 = sbr.rel (0) target = $region9
    $region8: #{tpu_custom_call.1} parent=1 // pred_region
      _
    $region9: #{tpu_custom_call.1} parent=1 // pred_fallthru
      _
    // Predicated region
    $region10: #{tpu_custom_call.1} parent=1 // pred_check
      _
    $region11: #{tpu_custom_call.1} parent=1 // pred_check_branch
      %27 = sbr.rel (0) target = $region13
    $region12: #{tpu_custom_call.1} parent=1 // pred_region
      _
    $region13: #{tpu_custom_call.1} parent=1 // pred_fallthru
      _
    // Predicated region
    $region14: #{tpu_custom_call.1} parent=1 // pred_check
      _
    $region15: #{tpu_custom_call.1} parent=1 // pred_check_branch
      %29 = sbr.rel (0) target = $region17
    $region16: #{tpu_custom_call.1} parent=1 // pred_region
      _
    $region17: #{tpu_custom_call.1} parent=1 // pred_fallthru
      _
    // Predicated region
    $region18: #{tpu_custom_call.1} parent=1 // pred_check
      _
    $region19: #{tpu_custom_call.1} parent=1 // pred_check_branch
      %31 = sbr.rel (0) target = $region21
    $region20: #{tpu_custom_call.1} parent=1 // pred_region
      _
    $region21: #{tpu_custom_call.1} parent=1 // pred_fallthru
      _
    // Predicated region
    $region22: #{tpu_custom_call.1} parent=1 // pred_check
      _
    $region23: #{tpu_custom_call.1} parent=1 // pred_check_branch
      %33 = sbr.rel (0) target = $region25
    $region24: #{tpu_custom_call.1} parent=1 // pred_region
      _
    $region25: #{tpu_custom_call.1} parent=1 // pred_fallthru
      _
    // Predicated region
    $region26: #{tpu_custom_call.1} parent=1 // pred_check
      _
    $region27: #{tpu_custom_call.1} parent=1 // pred_check_branch
      %35 = sbr.rel (0) target = $region29
    $region28: #{tpu_custom_call.1} parent=1 // pred_region
      _
    $region29: #{tpu_custom_call.1} parent=1 // pred_fallthru
      _
    // Predicated region
    $region30: #{tpu_custom_call.1} parent=1 // pred_check
      _
    $region31: #{tpu_custom_call.1} parent=1 // pred_check_branch
      %37 = sbr.rel (0) target = $region33
    $region32: #{tpu_custom_call.1} parent=1 // pred_region
      %38 = dma.done [#allocation3], 128
    $region33: #{tpu_custom_call.1} parent=1 // pred_fallthru
      _
    %v39 = vld [vmem:[#allocation2] sm:$0xff]
    %v40 = vld [vmem:[%s1] sm:$0xff]
    %v41 = vld [vmem:[%s1 + $0x8] sm:$0xff]
    %v42 = vld [vmem:[%s1 + $0x10] sm:$0xf]
    %v43 = vld [vmem:[%s2] sm:$0x1]
    %v45 = vlaneseq
    %v46 = vshrl.u32 %v45, 7
    %v47 = vsub.s32 0, %v46
    %v48 = vrot.slane %v43, %v47
    %vm50 = vcmask 80896
    %v52 = vsel %vm50, %v39, 0
    %v55 = vsel %vm50, %v40, 0
    %v58 = vsel %vm50, %v41, 0
    %v61 = vsel %vm50, %v42, 0
    %63 = vmatprep.subr.mxu0 0.0
    %64 = vmatpush1.xpose.msra.mxu0 0.0
    %65 = vmatprep.subr.mxu0 0.0
    %66 = vmatpush1.xpose.msra.mxu0 0.0
    %67 = vmatprep.subr.mxu0 0.0
    %68 = vmatpush1.xpose.msra.mxu0 0.0
    %69 = vmatprep.subr.mxu0 0.0
    %70 = vmatpush1.xpose.msra.mxu0 0.0
    %71 = vmatprep.subr.mxu0 0.0
    %72 = vmatpush1.xpose.msra.mxu0 0.0
    %73 = vmatprep.subr.mxu0 0.0
    %74 = vmatpush1.xpose.msra.mxu0 0.0
    %75 = vmatprep.subr.mxu0 0.0
    %76 = vmatpush1.xpose.msra.mxu0 0.0
    %77 = vmatprep.subr.mxu0 0.0
    %78 = vmatpush1.xpose.msra.mxu0 0.0
    %79 = vmatprep.subr.mxu0 0.0
    %80 = vmatpush1.xpose.msra.mxu0 0.0
    %81 = vmatprep.subr.mxu0 0.0
    %82 = vmatpush1.xpose.msra.mxu0 0.0
    %83 = vmatprep.subr.mxu0 0.0
    %84 = vmatpush1.xpose.msra.mxu0 0.0
    %85 = vmatprep.subr.mxu0 0.0
    %86 = vmatpush1.xpose.msra.mxu0 0.0
    %87 = vmatprep.subr.mxu0 0.0
    %88 = vmatpush1.xpose.msra.mxu0 0.0
    %89 = vmatprep.subr.mxu0 0.0
    %90 = vmatpush1.xpose.msra.mxu0 %v61
    %91 = vmatprep.subr.mxu0 0.0
    %92 = vmatpush1.xpose.msra.mxu0 %v58
    %93 = vmatprep.subr.mxu0 0.0
    %94 = vmatpush1.xpose.msra.mxu0 %v55
    %95 = vmatprep.subr.mxu0 0.0
    %96 = vmatpush2.xpose.msra.mxu0 0.0
    %97 = vmatprep.subr.mxu0 0.0
    %98 = vmatpush2.xpose.msra.mxu0 0.0
    %99 = vmatprep.subr.mxu0 0.0
    %100 = vmatpush2.xpose.msra.mxu0 0.0
    %101 = vmatprep.subr.mxu0 0.0
    %102 = vmatpush2.xpose.msra.mxu0 0.0
    %103 = vmatprep.subr.mxu0 0.0
    %104 = vmatpush2.xpose.msra.mxu0 0.0
    %105 = vmatprep.subr.mxu0 0.0
    %106 = vmatpush2.xpose.msra.mxu0 0.0
    %107 = vmatprep.subr.mxu0 0.0
    %108 = vmatpush2.xpose.msra.mxu0 0.0
    %109 = vmatprep.subr.mxu0 0.0
    %110 = vmatpush2.xpose.msra.mxu0 0.0
    %111 = vmatprep.subr.mxu0 0.0
    %112 = vmatpush2.xpose.msra.mxu0 0.0
    %113 = vmatprep.subr.mxu0 0.0
    %114 = vmatpush2.xpose.msra.mxu0 0.0
    %115 = vmatprep.subr.mxu0 0.0
    %116 = vmatpush2.xpose.msra.mxu0 0.0
    %117 = vmatprep.subr.mxu0 0.0
    %118 = vmatpush2.xpose.msra.mxu0 0.0
    %119 = vmatprep.subr.mxu0 0.0
    %120 = vmatpush2.xpose.msra.mxu0 0.0
    %121 = vmatprep.subr.mxu0 0.0
    %122 = vmatpush2.xpose.msra.mxu0 0.0
    %123 = vmatprep.subr.mxu0 0.0
    %124 = vmatpush2.xpose.msra.mxu0 0.0
    %125 = vmatprep.subr.mxu0 0.0
    %126 = vmatpush2.xpose.msra.mxu0 0.0
    %127 = vmatprep.mubr.f32.mxu0 0.0
    %128 = vmatmul.mubr.f32.gmra.mxu0 %v52
    %v129 = vpop.f32.mrf.mxu0
    %v130 = vadd.f32 %v48, %v129
    %v131 = vpop.f32.mrf.mxu0
    %132 = vdwg.mxu0
    %v133 = vld [vmem:[%s3] sm:$0xff]
    %v134 = vld [vmem:[%s3 + $0x8] sm:$0xff]
    %v135 = vld [vmem:[%s3 + $0x10] sm:$0xf]
    %v136 = vld [vmem:[%s4] sm:$0x1]
    %v138 = vlaneseq
    %v139 = vshrl.u32 %v138, 7
    %v140 = vsub.s32 0, %v139
    %v141 = vrot.slane %v136, %v140
    %vm143 = vcmask 162816
    %v145 = vsel %vm143, %v130, 0
    %v148 = vsel %vm143, %v133, 0
    %v151 = vsel %vm143, %v134, 0
    %v154 = vsel %vm143, %v135, 0
    %156 = vmatprep.subr.mxu0 0.0
    %157 = vmatpush1.xpose.msra.mxu0 0.0
    %158 = vmatprep.subr.mxu0 0.0
    %159 = vmatpush1.xpose.msra.mxu0 0.0
    %160 = vmatprep.subr.mxu0 0.0
    %161 = vmatpush1.xpose.msra.mxu0 0.0
    %162 = vmatprep.subr.mxu0 0.0
    %163 = vmatpush1.xpose.msra.mxu0 0.0
    %164 = vmatprep.subr.mxu0 0.0
    %165 = vmatpush1.xpose.msra.mxu0 0.0
    %166 = vmatprep.subr.mxu0 0.0
    %167 = vmatpush1.xpose.msra.mxu0 0.0
    %168 = vmatprep.subr.mxu0 0.0
    %169 = vmatpush1.xpose.msra.mxu0 0.0
    %170 = vmatprep.subr.mxu0 0.0
    %171 = vmatpush1.xpose.msra.mxu0 0.0
    %172 = vmatprep.subr.mxu0 0.0
    %173 = vmatpush1.xpose.msra.mxu0 0.0
    %174 = vmatprep.subr.mxu0 0.0
    %175 = vmatpush1.xpose.msra.mxu0 0.0
    %176 = vmatprep.subr.mxu0 0.0
    %177 = vmatpush1.xpose.msra.mxu0 0.0
    %178 = vmatprep.subr.mxu0 0.0
    %179 = vmatpush1.xpose.msra.mxu0 0.0
    %180 = vmatprep.subr.mxu0 0.0
    %181 = vmatpush1.xpose.msra.mxu0 0.0
    %182 = vmatprep.subr.mxu0 0.0
    %183 = vmatpush1.xpose.msra.mxu0 %v154
    %184 = vmatprep.subr.mxu0 0.0
    %185 = vmatpush1.xpose.msra.mxu0 %v151
    %186 = vmatprep.subr.mxu0 0.0
    %187 = vmatpush1.xpose.msra.mxu0 %v148
    %188 = vmatprep.subr.mxu0 0.0
    %189 = vmatpush2.xpose.msra.mxu0 0.0
    %190 = vmatprep.subr.mxu0 0.0
    %191 = vmatpush2.xpose.msra.mxu0 0.0
    %192 = vmatprep.subr.mxu0 0.0
    %193 = vmatpush2.xpose.msra.mxu0 0.0
    %194 = vmatprep.subr.mxu0 0.0
    %195 = vmatpush2.xpose.msra.mxu0 0.0
    %196 = vmatprep.subr.mxu0 0.0
    %197 = vmatpush2.xpose.msra.mxu0 0.0
    %198 = vmatprep.subr.mxu0 0.0
    %199 = vmatpush2.xpose.msra.mxu0 0.0
    %200 = vmatprep.subr.mxu0 0.0
    %201 = vmatpush2.xpose.msra.mxu0 0.0
    %202 = vmatprep.subr.mxu0 0.0
    %203 = vmatpush2.xpose.msra.mxu0 0.0
    %204 = vmatprep.subr.mxu0 0.0
    %205 = vmatpush2.xpose.msra.mxu0 0.0
    %206 = vmatprep.subr.mxu0 0.0
    %207 = vmatpush2.xpose.msra.mxu0 0.0
    %208 = vmatprep.subr.mxu0 0.0
    %209 = vmatpush2.xpose.msra.mxu0 0.0
    %210 = vmatprep.subr.mxu0 0.0
    %211 = vmatpush2.xpose.msra.mxu0 0.0
    %212 = vmatprep.subr.mxu0 0.0
    %213 = vmatpush2.xpose.msra.mxu0 0.0
    %214 = vmatprep.subr.mxu0 0.0
    %215 = vmatpush2.xpose.msra.mxu0 0.0
    %216 = vmatprep.subr.mxu0 0.0
    %217 = vmatpush2.xpose.msra.mxu0 0.0
    %218 = vmatprep.subr.mxu0 0.0
    %219 = vmatpush2.xpose.msra.mxu0 0.0
    %220 = vmatprep.mubr.f32.mxu0 0.0
    %221 = vmatmul.mubr.f32.gmra.mxu0 %v145
    %v222 = vpop.f32.mrf.mxu0
    %v223 = vadd.f32 %v141, %v222
    %v224 = vpop.f32.mrf.mxu0
    %225 = vdwg.mxu0
    %v226 = vround.ne.pseudo %v223
    %v227 = vadd.f32 %v226, %v130
    %v228 = vld [vmem:[%s5] sm:$0xff]
    %v229 = vld [vmem:[%s5 + $0x8] sm:$0x3]
    %v230 = vld [vmem:[%s6] sm:$0x1]
    %v232 = vlaneseq
    %v233 = vshrl.u32 %v232, 7
    %v234 = vsub.s32 0, %v233
    %v235 = vrot.slane %v230, %v234
    %v238 = vsel %vm143, %v227, 0
    %v241 = vsel %vm143, %v228, 0
    %v244 = vsel %vm143, %v229, 0
    %246 = vmatprep.subr.mxu0 0.0
    %247 = vmatpush1.xpose.msra.mxu0 0.0
    %248 = vmatprep.subr.mxu0 0.0
    %249 = vmatpush1.xpose.msra.mxu0 0.0
    %250 = vmatprep.subr.mxu0 0.0
    %251 = vmatpush1.xpose.msra.mxu0 0.0
    %252 = vmatprep.subr.mxu0 0.0
    %253 = vmatpush1.xpose.msra.mxu0 0.0
    %254 = vmatprep.subr.mxu0 0.0
    %255 = vmatpush1.xpose.msra.mxu0 0.0
    %256 = vmatprep.subr.mxu0 0.0
    %257 = vmatpush1.xpose.msra.mxu0 0.0
    %258 = vmatprep.subr.mxu0 0.0
    %259 = vmatpush1.xpose.msra.mxu0 0.0
    %260 = vmatprep.subr.mxu0 0.0
    %261 = vmatpush1.xpose.msra.mxu0 0.0
    %262 = vmatprep.subr.mxu0 0.0
    %263 = vmatpush1.xpose.msra.mxu0 0.0
    %264 = vmatprep.subr.mxu0 0.0
    %265 = vmatpush1.xpose.msra.mxu0 0.0
    %266 = vmatprep.subr.mxu0 0.0
    %267 = vmatpush1.xpose.msra.mxu0 0.0
    %268 = vmatprep.subr.mxu0 0.0
    %269 = vmatpush1.xpose.msra.mxu0 0.0
    %270 = vmatprep.subr.mxu0 0.0
    %271 = vmatpush1.xpose.msra.mxu0 0.0
    %272 = vmatprep.subr.mxu0 0.0
    %273 = vmatpush1.xpose.msra.mxu0 0.0
    %274 = vmatprep.subr.mxu0 0.0
    %275 = vmatpush1.xpose.msra.mxu0 %v244
    %276 = vmatprep.subr.mxu0 0.0
    %277 = vmatpush1.xpose.msra.mxu0 %v241
    %278 = vmatprep.subr.mxu0 0.0
    %279 = vmatpush2.xpose.msra.mxu0 0.0
    %280 = vmatprep.subr.mxu0 0.0
    %281 = vmatpush2.xpose.msra.mxu0 0.0
    %282 = vmatprep.subr.mxu0 0.0
    %283 = vmatpush2.xpose.msra.mxu0 0.0
    %284 = vmatprep.subr.mxu0 0.0
    %285 = vmatpush2.xpose.msra.mxu0 0.0
    %286 = vmatprep.subr.mxu0 0.0
    %287 = vmatpush2.xpose.msra.mxu0 0.0
    %288 = vmatprep.subr.mxu0 0.0
    %289 = vmatpush2.xpose.msra.mxu0 0.0
    %290 = vmatprep.subr.mxu0 0.0
    %291 = vmatpush2.xpose.msra.mxu0 0.0
    %292 = vmatprep.subr.mxu0 0.0
    %293 = vmatpush2.xpose.msra.mxu0 0.0
    %294 = vmatprep.subr.mxu0 0.0
    %295 = vmatpush2.xpose.msra.mxu0 0.0
    %296 = vmatprep.subr.mxu0 0.0
    %297 = vmatpush2.xpose.msra.mxu0 0.0
    %298 = vmatprep.subr.mxu0 0.0
    %299 = vmatpush2.xpose.msra.mxu0 0.0
    %300 = vmatprep.subr.mxu0 0.0
    %301 = vmatpush2.xpose.msra.mxu0 0.0
    %302 = vmatprep.subr.mxu0 0.0
    %303 = vmatpush2.xpose.msra.mxu0 0.0
    %304 = vmatprep.subr.mxu0 0.0
    %305 = vmatpush2.xpose.msra.mxu0 0.0
    %306 = vmatprep.subr.mxu0 0.0
    %307 = vmatpush2.xpose.msra.mxu0 0.0
    %308 = vmatprep.subr.mxu0 0.0
    %309 = vmatpush2.xpose.msra.mxu0 0.0
    %310 = vmatprep.mubr.f32.mxu0 0.0
    %311 = vmatmul.mubr.f32.gmra.mxu0 %v238
    %v312 = vpop.f32.mrf.mxu0
    %v313 = vadd.f32 %v235, %v312
    %v314 = vpop.f32.mrf.mxu0
    %315 = vdwg.mxu0
    %316 = vst.msk [vmem:[#allocation5] sm:$0xff] %vm50, %v313
    // Predicated region
    $region34: #{tpu_custom_call.1} parent=1 // pred_check
      _
    $region35: #{tpu_custom_call.1} parent=1 // pred_check_branch
      %318 = sbr.rel (0) target = $region37
    $region36: #{tpu_custom_call.1} parent=1 // pred_region
      %s320 = ssub.s32 128, 128
      %321 = vsyncadd [#allocation4], %s320
      %s323 = sshll.u32 [#allocation5], 4
      %s324 = int_to_ptr.vmem [resolvable:$true] %s323
      %326 = dma.vmem_to_hbm [thread:$0]  %s324, 128, %s7, [#allocation4]
    $region37: #{tpu_custom_call.1} parent=1 // pred_fallthru
      _
    // Predicated region
    $region38: #{tpu_custom_call.1} parent=1 // pred_check
      _
    $region39: #{tpu_custom_call.1} parent=1 // pred_check_branch
      %328 = sbr.rel (0) target = $region41
    $region40: #{tpu_custom_call.1} parent=1 // pred_region
      %329 = dma.done [#allocation4], 128
    $region41: #{tpu_custom_call.1} parent=1 // pred_fallthru
      _
    %330 = vsyncpa [#allocation3], 1
    %331 = vsyncpa [#allocation4], 1

</llo_original>
